<compile_context>
chip_gen: v7x
topology: tpu7x:2x2x1
jax: 0.10.0
libtpu: 0.0.40
codegen_flags: <defaults>
</compile_context>

<pallas_src>
import functools

import jax
import jax.numpy as jnp
from jax import lax
from jax.experimental import pallas as pl
from jax.experimental.pallas import tpu as pltpu


def _round_up(x, m):
    return ((x + m - 1) // m) * m


def _pick_tile(n, cap, align):
    """Tile size <= cap (multiple of `align`) that minimizes padding waste."""
    n_al = _round_up(max(n, 1), align)
    if n_al <= cap:
        return n_al
    n_tiles = -(-n_al // cap)                       # ceil(n_al / cap)
    return _round_up(-(-n_al // n_tiles), align)    # ceil(n_al / n_tiles)


# --------------------------------------------------------------------------- #
# Kernel 1: Y' = Y @ W.T   (tiled over edges; bf16 operands, f32 accumulation)
# Emits an f32 copy (returned to the caller) and a compute_dtype copy that is
# streamed into the attention kernel.
# --------------------------------------------------------------------------- #
def _linear_kernel(y_ref, w_ref, yp_f32_ref, yp_lp_ref):
    acc = lax.dot_general(
        y_ref[...], w_ref[...],
        (((1,), (1,)), ((), ())),                   # contract last axes: no .T
        preferred_element_type=jnp.float32)
    yp_f32_ref[...] = acc
    yp_lp_ref[...] = acc.astype(yp_lp_ref.dtype)


# --------------------------------------------------------------------------- #
# Kernel 2: X' = X + softmax(X @ Y'.T) [* assoc_mask] @ Y'   (online softmax)
# grid = (node tiles [parallel], edge tiles [arbitrary / reduction])
# --------------------------------------------------------------------------- #
def _attn_kernel(x_ref, yp_ref, *rest, local, activation, compute_dtype,
                 num_edges, num_edges_padded, tile_n, tile_e):
    if local:
        ei_ref, o_ref, m_sc, l_sc, acc_sc = rest
    else:
        o_ref, m_sc, l_sc, acc_sc = rest

    k = pl.program_id(1)

    @pl.when(k == 0)
    def _():
        m_sc[...] = jnp.full_like(m_sc, -jnp.inf)
        l_sc[...] = jnp.zeros_like(l_sc)
        acc_sc[...] = jnp.zeros_like(acc_sc)

    yp = yp_ref[...]                                 # (te, Dp) compute_dtype
    x_b = x_ref[...].astype(compute_dtype)           # (tn, Dp)

    # scores tile: contract feature axes directly (no .T / XLU transpose)
    s = lax.dot_general(
        x_b, yp, (((1,), (1,)), ((), ())),
        preferred_element_type=jnp.float32)          # (tn, te) f32

    # mask padded edge columns so they don't enter the softmax normalizer.
    # Statically skipped when there is no edge padding; otherwise built at
    # (1, tile_e) and broadcast by jnp.where.
    if num_edges_padded != num_edges:
        edge_ids = k * tile_e + lax.broadcasted_iota(jnp.int32, (1, tile_e), 1)
        s = jnp.where(edge_ids < num_edges, s, -jnp.inf)

    # online softmax update (denominator over ALL valid edges, as in reference)
    m_prev = m_sc[...]
    m_new = jnp.maximum(m_prev, jnp.max(s, axis=1, keepdims=True))
    alpha = jnp.exp(m_prev - m_new)
    p = jnp.exp(s - m_new)                           # (tn, te), f32 VPU/EUP math
    l_sc[...] = alpha * l_sc[...] + jnp.sum(p, axis=1, keepdims=True)

    if local:
        # regenerate the binary node<->edge association mask in-kernel and fuse
        # it into the numerator only (reference applies mask AFTER softmax).
        i = pl.program_id(0)
        node_ids = i * tile_n + lax.broadcasted_iota(jnp.int32, (tile_n, 1), 0)
        ei = ei_ref[...]                             # (2, te) int32
        src = ei[0:1, :]
        dst = ei[1:2, :]
        assoc = jnp.logical_or(node_ids == src, node_ids == dst)
        p = jnp.where(assoc, p, 0.0)

    acc_sc[...] = alpha * acc_sc[...] + lax.dot_general(
        p.astype(compute_dtype), yp, (((1,), (0,)), ((), ())),
        preferred_element_type=jnp.float32)          # (tn, Dp) f32 accumulate
    m_sc[...] = m_new

    @pl.when(k == pl.num_programs(1) - 1)
    def _():
        inv_l = 1.0 / l_sc[...]                      # exact divide (epilogue only)
        x_prime = x_ref[...] + acc_sc[...] * inv_l   # residual in f32
        if activation == "relu":
            x_prime = jnp.maximum(x_prime, 0.0)
        # TODO(synk): arbitrary torch activation callables would need explicit mapping.
        o_ref[...] = x_prime.astype(o_ref.dtype)


# --------------------------------------------------------------------------- #
# Wrapper
# --------------------------------------------------------------------------- #
def graph_attention_edge_conv(X, Y, W, edge_index=None, *, local=False,
                              activation=None, compute_dtype=jnp.bfloat16):
    """Pallas-backed forward of GraphAttentionEdgeConv. Returns (X', Y').

    compute_dtype: dtype of the MXU matmul operands (accumulation, softmax,
    residual and outputs stay f32). bf16 is the default (full-rate MXU on
    v5e/v6e/v7x); pass jnp.float32 for full-precision operands.
    """
    num_nodes, node_dim = X.shape
    num_edges, in_edge_dim = Y.shape
    out_dim, w_in = W.shape
    assert w_in == in_edge_dim
    assert out_dim == node_dim, "out_features must equal node dim (X @ Y'.T + residual)"
    assert num_edges > 0
    if local:
        assert edge_index is not None

    # lane-dense padding of feature dims; padding-waste-aware tile sizes.
    d_p = _round_up(out_dim, 128)
    f_p = _round_up(in_edge_dim, 128)
    tile_n = _pick_tile(num_nodes, 512, 8)       # node axis (sublane-aligned)
    tile_e = _pick_tile(num_edges, 1024, 128)    # edge axis (lane-aligned)
    n_p = _round_up(num_nodes, tile_n)
    e_p = _round_up(num_edges, tile_e)

    f32 = jnp.float32
    x_p = jnp.zeros((n_p, d_p), f32).at[:num_nodes, :node_dim].set(X.astype(f32))
    y_p = jnp.zeros((e_p, f_p), compute_dtype).at[:num_edges, :in_edge_dim].set(
        Y.astype(compute_dtype))
    w_p = jnp.zeros((d_p, f_p), compute_dtype).at[:out_dim, :in_edge_dim].set(
        W.astype(compute_dtype))

    # ---- kernel 1: Y' = Y @ W.T (f32 copy returned, compute_dtype copy fed on) #
    yp_f32, yp_lp = pl.pallas_call(
        _linear_kernel,
        grid=(e_p // tile_e,),
        in_specs=[
            pl.BlockSpec((tile_e, f_p), lambda k: (k, 0)),
            pl.BlockSpec((d_p, f_p), lambda k: (0, 0)),
        ],
        out_specs=[
            pl.BlockSpec((tile_e, d_p), lambda k: (k, 0)),
            pl.BlockSpec((tile_e, d_p), lambda k: (k, 0)),
        ],
        out_shape=(jax.ShapeDtypeStruct((e_p, d_p), f32),
                   jax.ShapeDtypeStruct((e_p, d_p), compute_dtype)),
        compiler_params=pltpu.CompilerParams(
            dimension_semantics=("parallel",)),
    )(y_p, w_p)

    # ---- kernel 2: attention + residual (+ optional mask / activation) ----- #
    kernel = functools.partial(
        _attn_kernel, local=local, activation=activation,
        compute_dtype=compute_dtype, num_edges=num_edges,
        num_edges_padded=e_p, tile_n=tile_n, tile_e=tile_e)

    in_specs = [
        pl.BlockSpec((tile_n, d_p), lambda i, k: (i, 0)),   # X node tile (f32)
        pl.BlockSpec((tile_e, d_p), lambda i, k: (k, 0)),   # Y' edge tile (bf16)
    ]
    args = [x_p, yp_lp]
    if local:
        # edge_index as a tiny (2, e_p) int32 slab (row 0 = src, row 1 = dst).
        # Block (2, tile_e): first block dim equals the full array dim.
        ei_p = jnp.zeros((2, e_p), jnp.int32).at[:, :num_edges].set(
            jnp.asarray(edge_index, dtype=jnp.int32).T)
        in_specs.append(pl.BlockSpec((2, tile_e), lambda i, k: (0, k)))
        args.append(ei_p)

    xp_p = pl.pallas_call(
        kernel,
        grid=(n_p // tile_n, e_p // tile_e),
        in_specs=in_specs,
        out_specs=pl.BlockSpec((tile_n, d_p), lambda i, k: (i, 0)),
        out_shape=jax.ShapeDtypeStruct((n_p, d_p), f32),
        scratch_shapes=[
            pltpu.VMEM((tile_n, 1), jnp.float32),     # running row max
            pltpu.VMEM((tile_n, 1), jnp.float32),     # running row sum
            pltpu.VMEM((tile_n, d_p), jnp.float32),   # output accumulator
        ],
        compiler_params=pltpu.CompilerParams(
            dimension_semantics=("parallel", "arbitrary")),
    )(*args)

    x_prime = xp_p[:num_nodes, :out_dim]
    y_prime = yp_f32[:num_edges, :out_dim]
    return x_prime, y_prime


# --------------------------------------------------------------------------- #
# Pure-JAX reference (matches the PyTorch module semantics, f32 throughout)
# --------------------------------------------------------------------------- #
def _binary_edge_association_mask(edge_index, num_nodes):
    num_edges = edge_index.shape[0]
    mask = jnp.zeros((num_nodes, num_edges), dtype=jnp.float32)
    edge_ids = jnp.arange(num_edges)
    mask = mask.at[edge_index[:, 0], edge_ids].set(1.0)
    mask = mask.at[edge_index[:, 1], edge_ids].set(1.0)
    return mask


def _reference(X, Y, W, edge_index=None, *, local=False, activation=None):
    Y_prime = Y @ W.T
    attn = jax.nn.softmax(X @ Y_prime.T, axis=1)
    if local:
        attn = attn * _binary_edge_association_mask(edge_index, X.shape[0])
    X_prime = X + attn @ Y_prime
    if activation == "relu":
        X_prime = jnp.maximum(X_prime, 0.0)
    return X_prime, Y_prime


if __name__ == "__main__":
    key = jax.random.PRNGKey(0)
    k_x, k_y, k_w, k_e = jax.random.split(key, 4)

    num_nodes = 16
    num_edges = 32
    in_edge_features = 8
    out_features = 16          # must equal node feature dim

    X = jax.random.normal(k_x, (num_nodes, out_features), dtype=jnp.float32)
    Y = jax.random.normal(k_y, (num_edges, in_edge_features), dtype=jnp.float32)
    bound = 1.0 / (in_edge_features ** 0.5)
    W = jax.random.uniform(k_w, (out_features, in_edge_features),
                           minval=-bound, maxval=bound, dtype=jnp.float32)
    edge_index = jax.random.randint(k_e, (num_edges, 2), 0, num_nodes)

    # Tolerances reflect bf16 MXU operands (f32 accumulation / softmax math).
    Y_TOL = dict(atol=1e-2, rtol=1e-2)
    X_TOL = dict(atol=5e-2, rtol=5e-2)

    # local=False, activation=None (module defaults)
    x_prime, y_prime = graph_attention_edge_conv(X, Y, W, edge_index,
                                                 local=False, activation=None)
    jax.block_until_ready((x_prime, y_prime))
    x_ref, y_ref = _reference(X, Y, W, edge_index, local=False, activation=None)
    assert y_prime.shape == y_ref.shape and x_prime.shape == x_ref.shape
    assert jnp.allclose(y_prime, y_ref, **Y_TOL)
    assert jnp.allclose(x_prime, x_ref, **X_TOL)

    # local=True + relu path (mask regenerated in-kernel from edge_index)
    x_prime_l, y_prime_l = graph_attention_edge_conv(X, Y, W, edge_index,
                                                     local=True, activation="relu")
    jax.block_until_ready((x_prime_l, y_prime_l))
    x_ref_l, y_ref_l = _reference(X, Y, W, edge_index, local=True, activation="relu")
    assert jnp.allclose(y_prime_l, y_ref_l, **Y_TOL)
    assert jnp.allclose(x_prime_l, x_ref_l, **X_TOL)

    print("KERNEL_OK")
</pallas_src>

<mosaic_0001>
module attributes {stable_mosaic.version = 11 : i64} {
  func.func @_linear_kernel(%arg0: i32, %arg1: memref<128x128xbf16, #tpu.memory_space<vmem>>, %arg2: memref<128x128xbf16, #tpu.memory_space<vmem>>, %arg3: memref<128x128xf32, #tpu.memory_space<vmem>>, %arg4: memref<128x128xbf16, #tpu.memory_space<vmem>>) attributes {dimension_semantics = [#tpu.dimension_semantics<parallel>], iteration_bounds = array<i64: 1>, scalar_prefetch = 0 : i64, scratch_operands = 0 : i64, tpu.core_type = #tpu.core_type<tc>, window_params = [{transform_indices = @transform_0, window_bounds = array<i64: 128, 128>}, {pipeline_mode = #tpu.pipeline_mode<synchronous>, transform_indices = @transform_1, window_bounds = array<i64: 128, 128>}, {transform_indices = @transform_2, window_bounds = array<i64: 128, 128>}, {transform_indices = @transform_3, window_bounds = array<i64: 128, 128>}]} {
    %c0 = arith.constant 0 : index
    %c0_0 = arith.constant 0 : index
    %0 = vector.load %arg1[%c0, %c0_0] : memref<128x128xbf16, #tpu.memory_space<vmem>>, vector<128x128xbf16>
    %c0_1 = arith.constant 0 : index
    %c0_2 = arith.constant 0 : index
    %1 = vector.load %arg2[%c0_1, %c0_2] : memref<128x128xbf16, #tpu.memory_space<vmem>>, vector<128x128xbf16>
    %cst = arith.constant dense<0.000000e+00> : vector<128x128xf32>
    %2 = tpu.matmul %0, %1, %cst {dimension_numbers = #tpu.dot_dimension_numbers<[1], [1], [0], [0], [0, 0, 1, 0], [], []>} : vector<128x128xbf16>, vector<128x128xbf16>, vector<128x128xf32> -> vector<128x128xf32>
    %c0_3 = arith.constant 0 : index
    %c0_4 = arith.constant 0 : index
    %3 = vector.load %arg3[%c0_3, %c0_4] : memref<128x128xf32, #tpu.memory_space<vmem>>, vector<128x128xf32>
    tpu.vector_store %arg3[%c0_3, %c0_4], %2 {strides = array<i32>} : memref<128x128xf32, #tpu.memory_space<vmem>>, vector<128x128xf32>,
    %4 = arith.truncf %2 : vector<128x128xf32> to vector<128x128xbf16>
    %c0_5 = arith.constant 0 : index
    %c0_6 = arith.constant 0 : index
    %5 = vector.load %arg4[%c0_5, %c0_6] : memref<128x128xbf16, #tpu.memory_space<vmem>>, vector<128x128xbf16>
    tpu.vector_store %arg4[%c0_5, %c0_6], %4 {strides = array<i32>} : memref<128x128xbf16, #tpu.memory_space<vmem>>, vector<128x128xbf16>,
    return
  }
  func.func @transform_0(%arg0: i32) -> (i32, i32) {
    %c0_i32 = arith.constant 0 : i32
    %c0_i32_0 = arith.constant 0 : i32
    return %arg0, %c0_i32 : i32, i32
  }
  func.func @transform_1(%arg0: i32) -> (i32, i32) {
    %c0_i32 = arith.constant 0 : i32
    %c0_i32_0 = arith.constant 0 : i32
    %c0_i32_1 = arith.constant 0 : i32
    return %c0_i32, %c0_i32_0 : i32, i32
  }
  func.func @transform_2(%arg0: i32) -> (i32, i32) {
    %c0_i32 = arith.constant 0 : i32
    %c0_i32_0 = arith.constant 0 : i32
    return %arg0, %c0_i32 : i32, i32
  }
  func.func @transform_3(%arg0: i32) -> (i32, i32) {
    %c0_i32 = arith.constant 0 : i32
    %c0_i32_0 = arith.constant 0 : i32
    return %arg0, %c0_i32 : i32, i32
  }
}

</mosaic_0001>

<llo_original>
// kernel: tpu_custom_call.1
$region0: #{tpu_custom_call.1}
  #allocation0 [shape = 'u32[]', space=smem, size = 0x4, offset = 0x4, fixed_abs, tag = 'smem constant byte address 0x4 - core index']
  #allocation1 [shape = 'u32[144,128]{1,0:T(1,128)}', space=vmem, size = 0x12000, scoped, tag = 'internal scratch']
  %s0 = inlined_call_operand.hbm [shape: bf16[128,128], index: 0, kind: input, shape index: {}]
  %s1 = inlined_call_operand.hbm [shape: bf16[128,128], index: 1, kind: input, shape index: {}]
  %s2 = inlined_call_operand.hbm [shape: f32[128,128], index: 2, kind: output, shape index: {0}]
  %s3 = inlined_call_operand.hbm [shape: bf16[128,128], index: 3, kind: output, shape index: {1}]
  %4 = xla_tuple %s2, %s3
  %s5 = sld [smem:[#allocation0]]
  $region34: #{tpu_custom_call.1} parent=0
    _
  %s7 = ssub.s32 1, %s5
  %s8 = scalar_select 0, %s7, %s5
  $region1: #{tpu_custom_call.1} parent=0
    #allocation2 [shape = 'u8[32768]{0}', space=vmem, size = 0x8000, scoped, tag = 'input window, operand 0, single buffered']
    #allocation3 [shape = 's32[1]{0}', space=sflag, size = 0x4, scoped, tag = 'scoped memory for tpu_custom_call.1']
    #allocation4 [shape = 's32[1]{0}', space=sflag, size = 0x4, scoped, tag = 'scoped memory for tpu_custom_call.1']
    #allocation5 [shape = 'u8[32768]{0}', space=vmem, size = 0x8000, scoped, tag = 'input window, operand 1, single buffered']
    #allocation6 [shape = 's32[1]{0}', space=sflag, size = 0x4, scoped, tag = 'scoped memory for tpu_custom_call.1']
    #allocation7 [shape = 'u8[65536]{0}', space=vmem, size = 0x10000, scoped, tag = 'output window, operand 0, single buffered']
    #allocation8 [shape = 'u8[32768]{0}', space=vmem, size = 0x8000, scoped, tag = 'output window, operand 1, single buffered']
    #allocation9 [shape = 's32[1]{0}', space=sflag, size = 0x4, scoped, tag = 'scoped memory for tpu_custom_call.1']
    %9 = vsyncpa [#allocation3], 0
    %10 = vsyncpa [#allocation6], 0
    %11 = vsyncpa [#allocation4], 0
    %12 = vsyncpa [#allocation9], 0
    // Predicated region
    $region2: #{tpu_custom_call.1} parent=1 // pred_check
      _
    $region3: #{tpu_custom_call.1} parent=1 // pred_check_branch
      %14 = sbr.rel (0) target = $region5
    $region4: #{tpu_custom_call.1} parent=1 // pred_region
      %s16 = ssub.s32 1024, 1024
      %17 = vsyncadd [#allocation3], %s16
      %s18 = sshll.u32 [#allocation2], 4
      %s19 = int_to_ptr.vmem [resolvable:$true] %s18
      %24 = dma.hbm_to_vmem [thread:$0]  %s0, 1024, %s19, [#allocation3], 64, 64, 4
    $region5: #{tpu_custom_call.1} parent=1 // pred_fallthru
      _
    // Predicated region
    $region6: #{tpu_custom_call.1} parent=1 // pred_check
      _
    $region7: #{tpu_custom_call.1} parent=1 // pred_check_branch
      %26 = sbr.rel (0) target = $region9
    $region8: #{tpu_custom_call.1} parent=1 // pred_region
      %s28 = ssub.s32 1024, 1024
      %29 = vsyncadd [#allocation6], %s28
      %s30 = sshll.u32 [#allocation5], 4
      %s31 = int_to_ptr.vmem [resolvable:$true] %s30
      %36 = dma.hbm_to_vmem [thread:$0]  %s1, 1024, %s31, [#allocation6], 64, 64, 4
    $region9: #{tpu_custom_call.1} parent=1 // pred_fallthru
      _
    // Predicated region
    $region10: #{tpu_custom_call.1} parent=1 // pred_check
      _
    $region11: #{tpu_custom_call.1} parent=1 // pred_check_branch
      %38 = sbr.rel (0) target = $region13
    $region12: #{tpu_custom_call.1} parent=1 // pred_region
      %39 = dma.done [#allocation3], 1024
    $region13: #{tpu_custom_call.1} parent=1 // pred_fallthru
      _
    // Predicated region
    $region14: #{tpu_custom_call.1} parent=1 // pred_check
      _
    $region15: #{tpu_custom_call.1} parent=1 // pred_check_branch
      %41 = sbr.rel (0) target = $region17
    $region16: #{tpu_custom_call.1} parent=1 // pred_region
      %42 = dma.done [#allocation6], 1024
    $region17: #{tpu_custom_call.1} parent=1 // pred_fallthru
      _
    %v44 = vld [vmem:[#allocation2] sm:$0xf]
    %v45 = vld [vmem:[#allocation2 + $0x4] sm:$0xf]
    %v46 = vld [vmem:[#allocation2 + $0x8] sm:$0xf]
    %v47 = vld [vmem:[#allocation2 + $0xc] sm:$0xf]
    %v48 = vld [vmem:[#allocation2 + $0x10] sm:$0xf]
    %v49 = vld [vmem:[#allocation2 + $0x14] sm:$0xf]
    %v50 = vld [vmem:[#allocation2 + $0x18] sm:$0xf]
    %v51 = vld [vmem:[#allocation2 + $0x1c] sm:$0xf]
    %v52 = vld [vmem:[#allocation2 + $0x20] sm:$0xf]
    %v53 = vld [vmem:[#allocation2 + $0x24] sm:$0xf]
    %v54 = vld [vmem:[#allocation2 + $0x28] sm:$0xf]
    %v55 = vld [vmem:[#allocation2 + $0x2c] sm:$0xf]
    %v56 = vld [vmem:[#allocation2 + $0x30] sm:$0xf]
    %v57 = vld [vmem:[#allocation2 + $0x34] sm:$0xf]
    %v58 = vld [vmem:[#allocation2 + $0x38] sm:$0xf]
    %v59 = vld [vmem:[#allocation2 + $0x3c] sm:$0xf]
    %v60 = vld [vmem:[#allocation5] sm:$0xf]
    %v61 = vld [vmem:[#allocation5 + $0x4] sm:$0xf]
    %v62 = vld [vmem:[#allocation5 + $0x8] sm:$0xf]
    %v63 = vld [vmem:[#allocation5 + $0xc] sm:$0xf]
    %v64 = vld [vmem:[#allocation5 + $0x10] sm:$0xf]
    %v65 = vld [vmem:[#allocation5 + $0x14] sm:$0xf]
    %v66 = vld [vmem:[#allocation5 + $0x18] sm:$0xf]
    %v67 = vld [vmem:[#allocation5 + $0x1c] sm:$0xf]
    %v68 = vld [vmem:[#allocation5 + $0x20] sm:$0xf]
    %v69 = vld [vmem:[#allocation5 + $0x24] sm:$0xf]
    %v70 = vld [vmem:[#allocation5 + $0x28] sm:$0xf]
    %v71 = vld [vmem:[#allocation5 + $0x2c] sm:$0xf]
    %v72 = vld [vmem:[#allocation5 + $0x30] sm:$0xf]
    %v73 = vld [vmem:[#allocation5 + $0x34] sm:$0xf]
    %v74 = vld [vmem:[#allocation5 + $0x38] sm:$0xf]
    %v75 = vld [vmem:[#allocation5 + $0x3c] sm:$0xf]
    %v92 = vunpack.c.l.b16 %v44
    %v93 = vunpack.c.l.b16 %v45
    %v94 = vunpack.c.l.b16 %v46
    %v95 = vunpack.c.l.b16 %v47
    %v96 = vunpack.c.l.b16 %v48
    %v97 = vunpack.c.l.b16 %v49
    %v98 = vunpack.c.l.b16 %v50
    %v99 = vunpack.c.l.b16 %v51
    %v100 = vunpack.c.l.b16 %v52
    %v101 = vunpack.c.l.b16 %v53
    %v102 = vunpack.c.l.b16 %v54
    %v103 = vunpack.c.l.b16 %v55
    %v104 = vunpack.c.l.b16 %v56
    %v105 = vunpack.c.l.b16 %v57
    %v106 = vunpack.c.l.b16 %v58
    %v107 = vunpack.c.l.b16 %v59
    %v108 = vpack.c.b16 %v93, %v92
    %v109 = vpack.c.b16 %v95, %v94
    %v110 = vpack.c.b16 %v97, %v96
    %v111 = vpack.c.b16 %v99, %v98
    %v112 = vpack.c.b16 %v101, %v100
    %v113 = vpack.c.b16 %v103, %v102
    %v114 = vpack.c.b16 %v105, %v104
    %v115 = vpack.c.b16 %v107, %v106
    %v140 = vunpack.c.l.b16 %v60
    %v141 = vunpack.c.l.b16 %v61
    %v142 = vunpack.c.l.b16 %v62
    %v143 = vunpack.c.l.b16 %v63
    %v144 = vunpack.c.l.b16 %v64
    %v145 = vunpack.c.l.b16 %v65
    %v146 = vunpack.c.l.b16 %v66
    %v147 = vunpack.c.l.b16 %v67
    %v148 = vunpack.c.l.b16 %v68
    %v149 = vunpack.c.l.b16 %v69
    %v150 = vunpack.c.l.b16 %v70
    %v151 = vunpack.c.l.b16 %v71
    %v152 = vunpack.c.l.b16 %v72
    %v153 = vunpack.c.l.b16 %v73
    %v154 = vunpack.c.l.b16 %v74
    %v155 = vunpack.c.l.b16 %v75
    %v156 = vpack.c.b16 %v141, %v140
    %v157 = vpack.c.b16 %v143, %v142
    %v158 = vpack.c.b16 %v145, %v144
    %v159 = vpack.c.b16 %v147, %v146
    %v160 = vpack.c.b16 %v149, %v148
    %v161 = vpack.c.b16 %v151, %v150
    %v162 = vpack.c.b16 %v153, %v152
    %v163 = vpack.c.b16 %v155, %v154
    %172 = vmatprep.subr.bf16.mxu0 0
    %173 = vmatpush1.bf16.xpose.msra.mxu0 %v156
    %174 = vmatprep.subr.bf16.mxu0 0
    %175 = vmatpush1.bf16.xpose.msra.mxu0 %v157
    %176 = vmatprep.subr.bf16.mxu0 0
    %177 = vmatpush1.bf16.xpose.msra.mxu0 %v158
    %178 = vmatprep.subr.bf16.mxu0 0
    %179 = vmatpush1.bf16.xpose.msra.mxu0 %v159
    %180 = vmatprep.subr.bf16.mxu0 0
    %181 = vmatpush1.bf16.xpose.msra.mxu0 %v160
    %182 = vmatprep.subr.bf16.mxu0 0
    %183 = vmatpush1.bf16.xpose.msra.mxu0 %v161
    %184 = vmatprep.subr.bf16.mxu0 0
    %185 = vmatpush1.bf16.xpose.msra.mxu0 %v162
    %186 = vmatprep.subr.bf16.mxu0 0
    %187 = vmatpush1.bf16.xpose.msra.mxu0 %v163
    %188 = vmatprep.subr.bf16.mxu0 0
    %189 = vmatpush1.bf16.xpose.msra.mxu0 0
    %190 = vmatprep.subr.bf16.mxu0 0
    %191 = vmatpush1.bf16.xpose.msra.mxu0 0
    %192 = vmatprep.subr.bf16.mxu0 0
    %193 = vmatpush1.bf16.xpose.msra.mxu0 0
    %194 = vmatprep.subr.bf16.mxu0 0
    %195 = vmatpush1.bf16.xpose.msra.mxu0 0
    %196 = vmatprep.subr.bf16.mxu0 0
    %197 = vmatpush1.bf16.xpose.msra.mxu0 0
    %198 = vmatprep.subr.bf16.mxu0 0
    %199 = vmatpush1.bf16.xpose.msra.mxu0 0
    %200 = vmatprep.subr.bf16.mxu0 0
    %201 = vmatpush1.bf16.xpose.msra.mxu0 0
    %202 = vmatprep.subr.bf16.mxu0 0
    %203 = vmatpush1.bf16.xpose.msra.mxu0 0
    %204 = vmatprep.mubr.bf16.mxu0 0
    %205 = vmatmul.mubr.bf16.gmra.mrb[0].mxu0 %v108
    %v206 = vpop.f32.mrb[0].mxu0
    %v207 = vadd.f32 0.0, %v206
    %v208 = vpop.f32.mrb[0].mxu0
    %v209 = vpop.f32.mrb[0].mxu0
    %v210 = vadd.f32 0.0, %v209
    %v211 = vpop.f32.mrb[0].mxu0
    %212 = vmatprep.mubr.bf16.mxu0 0
    %213 = vmatmul.mubr.bf16.gmra.mrb[0].mxu0 %v109
    %v214 = vpop.f32.mrb[0].mxu0
    %v215 = vadd.f32 0.0, %v214
    %v216 = vpop.f32.mrb[0].mxu0
    %v217 = vpop.f32.mrb[0].mxu0
    %v218 = vadd.f32 0.0, %v217
    %v219 = vpop.f32.mrb[0].mxu0
    %220 = vmatprep.mubr.bf16.mxu0 0
    %221 = vmatmul.mubr.bf16.gmra.mrb[0].mxu0 %v110
    %v222 = vpop.f32.mrb[0].mxu0
    %v223 = vadd.f32 0.0, %v222
    %v224 = vpop.f32.mrb[0].mxu0
    %v225 = vpop.f32.mrb[0].mxu0
    %v226 = vadd.f32 0.0, %v225
    %v227 = vpop.f32.mrb[0].mxu0
    %228 = vmatprep.mubr.bf16.mxu0 0
    %229 = vmatmul.mubr.bf16.gmra.mrb[0].mxu0 %v111
    %v230 = vpop.f32.mrb[0].mxu0
    %v231 = vadd.f32 0.0, %v230
    %v232 = vpop.f32.mrb[0].mxu0
    %v233 = vpop.f32.mrb[0].mxu0
    %v234 = vadd.f32 0.0, %v233
    %v235 = vpop.f32.mrb[0].mxu0
    %236 = vmatprep.mubr.bf16.mxu0 0
    %237 = vmatmul.mubr.bf16.gmra.mrb[0].mxu0 %v112
    %v238 = vpop.f32.mrb[0].mxu0
    %v239 = vadd.f32 0.0, %v238
    %v240 = vpop.f32.mrb[0].mxu0
    %v241 = vpop.f32.mrb[0].mxu0
    %v242 = vadd.f32 0.0, %v241
    %v243 = vpop.f32.mrb[0].mxu0
    %244 = vmatprep.mubr.bf16.mxu0 0
    %245 = vmatmul.mubr.bf16.gmra.mrb[0].mxu0 %v113
    %v246 = vpop.f32.mrb[0].mxu0
    %v247 = vadd.f32 0.0, %v246
    %v248 = vpop.f32.mrb[0].mxu0
    %v249 = vpop.f32.mrb[0].mxu0
    %v250 = vadd.f32 0.0, %v249
    %v251 = vpop.f32.mrb[0].mxu0
    %252 = vmatprep.mubr.bf16.mxu0 0
    %253 = vmatmul.mubr.bf16.gmra.mrb[0].mxu0 %v114
    %v254 = vpop.f32.mrb[0].mxu0
    %v255 = vadd.f32 0.0, %v254
    %v256 = vpop.f32.mrb[0].mxu0
    %v257 = vpop.f32.mrb[0].mxu0
    %v258 = vadd.f32 0.0, %v257
    %v259 = vpop.f32.mrb[0].mxu0
    %260 = vmatprep.mubr.bf16.mxu0 0
    %261 = vmatmul.mubr.bf16.gmra.mrb[0].mxu0 %v115
    %v262 = vpop.f32.mrb[0].mxu0
    %v263 = vadd.f32 0.0, %v262
    %v264 = vpop.f32.mrb[0].mxu0
    %v265 = vpop.f32.mrb[0].mxu0
    %v266 = vadd.f32 0.0, %v265
    %v267 = vpop.f32.mrb[0].mxu0
    %268 = vdwg.mxu0
    %269 = vst [vmem:[#allocation7] sm:$0xff] %v207
    %270 = vst [vmem:[#allocation7 + $0x8] sm:$0xff] %v210
    %271 = vst [vmem:[#allocation7 + $0x10] sm:$0xff] %v215
    %272 = vst [vmem:[#allocation7 + $0x18] sm:$0xff] %v218
    %273 = vst [vmem:[#allocation7 + $0x20] sm:$0xff] %v223
    %274 = vst [vmem:[#allocation7 + $0x28] sm:$0xff] %v226
    %275 = vst [vmem:[#allocation7 + $0x30] sm:$0xff] %v231
    %276 = vst [vmem:[#allocation7 + $0x38] sm:$0xff] %v234
    %277 = vst [vmem:[#allocation7 + $0x40] sm:$0xff] %v239
    %278 = vst [vmem:[#allocation7 + $0x48] sm:$0xff] %v242
    %279 = vst [vmem:[#allocation7 + $0x50] sm:$0xff] %v247
    %280 = vst [vmem:[#allocation7 + $0x58] sm:$0xff] %v250
    %281 = vst [vmem:[#allocation7 + $0x60] sm:$0xff] %v255
    %282 = vst [vmem:[#allocation7 + $0x68] sm:$0xff] %v258
    %283 = vst [vmem:[#allocation7 + $0x70] sm:$0xff] %v263
    %284 = vst [vmem:[#allocation7 + $0x78] sm:$0xff] %v266
    %v285 = vpack.c.bf16 %v210, %v207
    %v286 = vpack.c.bf16 %v218, %v215
    %v287 = vpack.c.bf16 %v226, %v223
    %v288 = vpack.c.bf16 %v234, %v231
    %v289 = vpack.c.bf16 %v242, %v239
    %v290 = vpack.c.bf16 %v250, %v247
    %v291 = vpack.c.bf16 %v258, %v255
    %v292 = vpack.c.bf16 %v266, %v263
    %v301 = vunpack.c.l.b16 %v285
    %v302 = vunpack.c.h.b16 %v285
    %v303 = vunpack.c.l.b16 %v286
    %v304 = vunpack.c.h.b16 %v286
    %v305 = vunpack.c.l.b16 %v287
    %v306 = vunpack.c.h.b16 %v287
    %v307 = vunpack.c.l.b16 %v288
    %v308 = vunpack.c.h.b16 %v288
    %v309 = vunpack.c.l.b16 %v289
    %v310 = vunpack.c.h.b16 %v289
    %v311 = vunpack.c.l.b16 %v290
    %v312 = vunpack.c.h.b16 %v290
    %v313 = vunpack.c.l.b16 %v291
    %v314 = vunpack.c.h.b16 %v291
    %v315 = vunpack.c.l.b16 %v292
    %v316 = vunpack.c.h.b16 %v292
    %v317 = vpack.c.b16 %v301, %v301
    %v318 = vpack.c.b16 %v302, %v302
    %v319 = vpack.c.b16 %v303, %v303
    %v320 = vpack.c.b16 %v304, %v304
    %v321 = vpack.c.b16 %v305, %v305
    %v322 = vpack.c.b16 %v306, %v306
    %v323 = vpack.c.b16 %v307, %v307
    %v324 = vpack.c.b16 %v308, %v308
    %v325 = vpack.c.b16 %v309, %v309
    %v326 = vpack.c.b16 %v310, %v310
    %v327 = vpack.c.b16 %v311, %v311
    %v328 = vpack.c.b16 %v312, %v312
    %v329 = vpack.c.b16 %v313, %v313
    %v330 = vpack.c.b16 %v314, %v314
    %v331 = vpack.c.b16 %v315, %v315
    %v332 = vpack.c.b16 %v316, %v316
    %349 = vst [vmem:[#allocation8] sm:$0xf] %v317
    %350 = vst [vmem:[#allocation8 + $0x4] sm:$0xf] %v318
    %351 = vst [vmem:[#allocation8 + $0x8] sm:$0xf] %v319
    %352 = vst [vmem:[#allocation8 + $0xc] sm:$0xf] %v320
    %353 = vst [vmem:[#allocation8 + $0x10] sm:$0xf] %v321
    %354 = vst [vmem:[#allocation8 + $0x14] sm:$0xf] %v322
    %355 = vst [vmem:[#allocation8 + $0x18] sm:$0xf] %v323
    %356 = vst [vmem:[#allocation8 + $0x1c] sm:$0xf] %v324
    %357 = vst [vmem:[#allocation8 + $0x20] sm:$0xf] %v325
    %358 = vst [vmem:[#allocation8 + $0x24] sm:$0xf] %v326
    %359 = vst [vmem:[#allocation8 + $0x28] sm:$0xf] %v327
    %360 = vst [vmem:[#allocation8 + $0x2c] sm:$0xf] %v328
    %361 = vst [vmem:[#allocation8 + $0x30] sm:$0xf] %v329
    %362 = vst [vmem:[#allocation8 + $0x34] sm:$0xf] %v330
    %363 = vst [vmem:[#allocation8 + $0x38] sm:$0xf] %v331
    %364 = vst [vmem:[#allocation8 + $0x3c] sm:$0xf] %v332
    // Predicated region
    $region18: #{tpu_custom_call.1} parent=1 // pred_check
      _
    $region19: #{tpu_custom_call.1} parent=1 // pred_check_branch
      %366 = sbr.rel (0) target = $region21
    $region20: #{tpu_custom_call.1} parent=1 // pred_region
      %s368 = ssub.s32 2048, 2048
      %369 = vsyncadd [#allocation4], %s368
      %s370 = sshll.u32 [#allocation7], 4
      %s371 = int_to_ptr.vmem [resolvable:$true] %s370
      %376 = dma.vmem_to_hbm [thread:$0]  %s371, 2048, %s2, [#allocation4], 128, 128, 8
    $region21: #{tpu_custom_call.1} parent=1 // pred_fallthru
      _
    // Predicated region
    $region22: #{tpu_custom_call.1} parent=1 // pred_check
      _
    $region23: #{tpu_custom_call.1} parent=1 // pred_check_branch
      %378 = sbr.rel (0) target = $region25
    $region24: #{tpu_custom_call.1} parent=1 // pred_region
      %s380 = ssub.s32 1024, 1024
      %381 = vsyncadd [#allocation9], %s380
      %s382 = sshll.u32 [#allocation8], 4
      %s383 = int_to_ptr.vmem [resolvable:$true] %s382
      %388 = dma.vmem_to_hbm [thread:$0]  %s383, 1024, %s3, [#allocation9], 64, 64, 4
    $region25: #{tpu_custom_call.1} parent=1 // pred_fallthru
      _
    // Predicated region
    $region26: #{tpu_custom_call.1} parent=1 // pred_check
      _
    $region27: #{tpu_custom_call.1} parent=1 // pred_check_branch
      %390 = sbr.rel (0) target = $region29
    $region28: #{tpu_custom_call.1} parent=1 // pred_region
      %391 = dma.done [#allocation4], 2048
    $region29: #{tpu_custom_call.1} parent=1 // pred_fallthru
      _
    // Predicated region
    $region30: #{tpu_custom_call.1} parent=1 // pred_check
      _
    $region31: #{tpu_custom_call.1} parent=1 // pred_check_branch
      %393 = sbr.rel (0) target = $region33
    $region32: #{tpu_custom_call.1} parent=1 // pred_region
      %394 = dma.done [#allocation9], 1024
    $region33: #{tpu_custom_call.1} parent=1 // pred_fallthru
      _
    %395 = vsyncpa [#allocation3], 1
    %396 = vsyncpa [#allocation6], 1
    %397 = vsyncpa [#allocation4], 1
    %398 = vsyncpa [#allocation9], 1

</llo_original>
